<compile_context>
chip_gen: v6e
topology: v6e:2x2x1
jax: 0.10.0
libtpu: 0.0.40
codegen_flags: <defaults>
</compile_context>

<pallas_src>
import jax
import jax.numpy as jnp
import numpy as np
from jax.experimental import pallas as pl
from jax.experimental.pallas import tpu as pltpu


def _make_phase_shuffle_kernel(shift_factor):
    n = shift_factor

    def kernel(k_ref, x_ref, o_ref):
        # k_ref: SMEM int32[B] (scalar-prefetched per-batch shifts)
        # x_ref, o_ref: VMEM blocks of shape (tc, T)  (batch dim squeezed)
        b = pl.program_id(0)
        k = k_ref[b]
        T = o_ref.shape[-1]

        # Exactly one of these 2n+1 branches executes (|k| <= n by construction).
        for s in range(-n, n + 1):

            @pl.when(k == s)
            def _(s=s):
                if s == 0:
                    o_ref[...] = x_ref[...]
                elif s > 0:
                    # interior: out[:, s:] = x[:, :T-s]
                    o_ref[:, s:] = x_ref[:, : T - s]
                    # reflected left boundary: out[:, i] = x[:, s - i], i < s
                    for i in range(s):
                        o_ref[:, i : i + 1] = x_ref[:, s - i : s - i + 1]
                else:
                    m = -s
                    # interior: out[:, :T-m] = x[:, m:]
                    o_ref[:, : T - m] = x_ref[:, m:]
                    # reflected right boundary: out[:, T-m+j] = x[:, T-2-j]
                    for j in range(m):
                        o_ref[:, T - m + j : T - m + j + 1] = (
                            x_ref[:, T - 2 - j : T - 1 - j]
                        )

    return kernel


def _choose_channel_tile(C, T, itemsize, budget_bytes=2 * 1024 * 1024):
    """Largest divisor of C whose (tc, T) block stays under the VMEM budget."""
    if C * T * itemsize <= budget_bytes:
        return C
    best = 1
    for d in range(1, C + 1):
        if C % d == 0 and d * T * itemsize <= budget_bytes:
            best = d
    return best


def phase_shuffle(x, k_list, shift_factor):
    """x: (B, C, T); k_list: int32 (B,) with values in [-shift_factor, shift_factor]."""
    B, C, T = x.shape
    assert shift_factor < T, "reflection shift must be smaller than the time axis"
    k_list = k_list.astype(jnp.int32)

    tc = _choose_channel_tile(C, T, jnp.dtype(x.dtype).itemsize)
    kernel = _make_phase_shuffle_kernel(shift_factor)

    return pl.pallas_call(
        kernel,
        out_shape=jax.ShapeDtypeStruct((B, C, T), x.dtype),
        grid_spec=pltpu.PrefetchScalarGridSpec(
            num_scalar_prefetch=1,
            grid=(B, C // tc),
            in_specs=[pl.BlockSpec((None, tc, T), lambda b, c, k_ref: (b, c, 0))],
            out_specs=pl.BlockSpec((None, tc, T), lambda b, c, k_ref: (b, c, 0)),
        ),
        compiler_params=pltpu.CompilerParams(
            dimension_semantics=("parallel", "parallel"),
        ),
    )(k_list, x)


class PhaseShufflePallas:
    """Mirrors the PyTorch PhaseShuffle module (no learnable params)."""

    def __init__(self, shift_factor):
        self.shift_factor = shift_factor

    def __call__(self, x, key):
        if self.shift_factor == 0:
            return x
        B = x.shape[0]
        # uniform over {-n, ..., n}, matching torch .random_(0, 2n+1) - n
        k_list = jax.random.randint(
            key, (B,), -self.shift_factor, self.shift_factor + 1, dtype=jnp.int32
        )
        return phase_shuffle(x, k_list, self.shift_factor)


def _reference(x, k_list):
    # Pure-JAX reference of the reflected-shift semantics.
    B, C, T = x.shape
    idx = jnp.arange(T)
    outs = []
    for b in range(B):
        k = int(k_list[b])
        j = idx - k
        src = jnp.where(j < 0, -j, jnp.where(j > T - 1, 2 * (T - 1) - j, j))
        outs.append(x[b][:, src])
    return jnp.stack(outs)


if __name__ == "__main__":
    key = jax.random.PRNGKey(0)
    kx, kk = jax.random.split(key)

    B, C, T = 2, 4, 16
    shift_factor = 2
    x = jax.random.normal(kx, (B, C, T), dtype=jnp.float32)

    module = PhaseShufflePallas(shift_factor)
    out = jax.block_until_ready(module(x, kk))

    # sanity check against the pure-JAX reference using the same k draws
    k_list = jax.random.randint(
        kk, (B,), -shift_factor, shift_factor + 1, dtype=jnp.int32
    )
    ref = _reference(x, np.asarray(k_list))
    assert out.shape == x.shape
    np.testing.assert_array_equal(np.asarray(out), np.asarray(ref))

    print("KERNEL_OK")
</pallas_src>

<mosaic_0001>
module attributes {stable_mosaic.version = 11 : i64} {
  func.func @kernel(%arg0: i32, %arg1: i32, %arg2: memref<2xi32, #tpu.memory_space<smem>>, %arg3: memref<1x4x16xf32, #tpu.memory_space<vmem>>, %arg4: memref<1x4x16xf32, #tpu.memory_space<vmem>>) attributes {dimension_semantics = [#tpu.dimension_semantics<parallel>, #tpu.dimension_semantics<parallel>], iteration_bounds = array<i64: 2, 1>, scalar_prefetch = 1 : i64, scratch_operands = 0 : i64, tpu.core_type = #tpu.core_type<tc>, window_params = [{transform_indices = @transform_0, window_bounds = array<i64: 1, 4, 16>}, {transform_indices = @transform_1, window_bounds = array<i64: 1, 4, 16>}]} {
    %0 = arith.index_cast %arg0 : i32 to index
    %1 = memref.load %arg2[%0] : memref<2xi32, #tpu.memory_space<smem>>
    %c-2_i32 = arith.constant -2 : i32
    %2 = arith.cmpi eq, %1, %c-2_i32 : i32
    %3 = arith.extui %2 : i1 to i32
    %c0_i32 = arith.constant 0 : i32
    %4 = arith.cmpi ne, %3, %c0_i32 : i32
    scf.if %4 {
      %c0 = arith.constant 0 : index
      %c0_5 = arith.constant 0 : index
      %c2 = arith.constant 2 : index
      %17 = vector.load %arg3[%c0, %c0_5, %c2] : memref<1x4x16xf32, #tpu.memory_space<vmem>>, vector<1x4x14xf32>
      %18 = vector.shape_cast %17 : vector<1x4x14xf32> to vector<4x14xf32>
      %c0_6 = arith.constant 0 : index
      %c0_7 = arith.constant 0 : index
      %c0_8 = arith.constant 0 : index
      %19 = vector.load %arg4[%c0_6, %c0_7, %c0_8] : memref<1x4x16xf32, #tpu.memory_space<vmem>>, vector<1x4x14xf32>
      %20 = vector.shape_cast %19 : vector<1x4x14xf32> to vector<4x14xf32>
      %21 = vector.shape_cast %18 : vector<4x14xf32> to vector<1x4x14xf32>
      tpu.vector_store %arg4[%c0_6, %c0_7, %c0_8], %21 {strides = array<i32>} : memref<1x4x16xf32, #tpu.memory_space<vmem>>, vector<1x4x14xf32>,
      %c0_9 = arith.constant 0 : index
      %c0_10 = arith.constant 0 : index
      %c14 = arith.constant 14 : index
      %22 = vector.load %arg3[%c0_9, %c0_10, %c14] : memref<1x4x16xf32, #tpu.memory_space<vmem>>, vector<1x4x1xf32>
      %23 = vector.shape_cast %22 : vector<1x4x1xf32> to vector<4x1xf32>
      %c0_11 = arith.constant 0 : index
      %c0_12 = arith.constant 0 : index
      %c14_13 = arith.constant 14 : index
      %24 = vector.load %arg4[%c0_11, %c0_12, %c14_13] : memref<1x4x16xf32, #tpu.memory_space<vmem>>, vector<1x4x1xf32>
      %25 = vector.shape_cast %24 : vector<1x4x1xf32> to vector<4x1xf32>
      %26 = vector.shape_cast %23 : vector<4x1xf32> to vector<1x4x1xf32>
      tpu.vector_store %arg4[%c0_11, %c0_12, %c14_13], %26 {strides = array<i32>} : memref<1x4x16xf32, #tpu.memory_space<vmem>>, vector<1x4x1xf32>,
      %c0_14 = arith.constant 0 : index
      %c0_15 = arith.constant 0 : index
      %c13 = arith.constant 13 : index
      %27 = vector.load %arg3[%c0_14, %c0_15, %c13] : memref<1x4x16xf32, #tpu.memory_space<vmem>>, vector<1x4x1xf32>
      %28 = vector.shape_cast %27 : vector<1x4x1xf32> to vector<4x1xf32>
      %c0_16 = arith.constant 0 : index
      %c0_17 = arith.constant 0 : index
      %c15 = arith.constant 15 : index
      %29 = vector.load %arg4[%c0_16, %c0_17, %c15] : memref<1x4x16xf32, #tpu.memory_space<vmem>>, vector<1x4x1xf32>
      %30 = vector.shape_cast %29 : vector<1x4x1xf32> to vector<4x1xf32>
      %31 = vector.shape_cast %28 : vector<4x1xf32> to vector<1x4x1xf32>
      tpu.vector_store %arg4[%c0_16, %c0_17, %c15], %31 {strides = array<i32>} : memref<1x4x16xf32, #tpu.memory_space<vmem>>, vector<1x4x1xf32>,
    } else {
    }
    %c-1_i32 = arith.constant -1 : i32
    %5 = arith.cmpi eq, %1, %c-1_i32 : i32
    %6 = arith.extui %5 : i1 to i32
    %c0_i32_0 = arith.constant 0 : i32
    %7 = arith.cmpi ne, %6, %c0_i32_0 : i32
    scf.if %7 {
      %c0 = arith.constant 0 : index
      %c0_5 = arith.constant 0 : index
      %c1 = arith.constant 1 : index
      %17 = vector.load %arg3[%c0, %c0_5, %c1] : memref<1x4x16xf32, #tpu.memory_space<vmem>>, vector<1x4x15xf32>
      %18 = vector.shape_cast %17 : vector<1x4x15xf32> to vector<4x15xf32>
      %c0_6 = arith.constant 0 : index
      %c0_7 = arith.constant 0 : index
      %c0_8 = arith.constant 0 : index
      %19 = vector.load %arg4[%c0_6, %c0_7, %c0_8] : memref<1x4x16xf32, #tpu.memory_space<vmem>>, vector<1x4x15xf32>
      %20 = vector.shape_cast %19 : vector<1x4x15xf32> to vector<4x15xf32>
      %21 = vector.shape_cast %18 : vector<4x15xf32> to vector<1x4x15xf32>
      tpu.vector_store %arg4[%c0_6, %c0_7, %c0_8], %21 {strides = array<i32>} : memref<1x4x16xf32, #tpu.memory_space<vmem>>, vector<1x4x15xf32>,
      %c0_9 = arith.constant 0 : index
      %c0_10 = arith.constant 0 : index
      %c14 = arith.constant 14 : index
      %22 = vector.load %arg3[%c0_9, %c0_10, %c14] : memref<1x4x16xf32, #tpu.memory_space<vmem>>, vector<1x4x1xf32>
      %23 = vector.shape_cast %22 : vector<1x4x1xf32> to vector<4x1xf32>
      %c0_11 = arith.constant 0 : index
      %c0_12 = arith.constant 0 : index
      %c15 = arith.constant 15 : index
      %24 = vector.load %arg4[%c0_11, %c0_12, %c15] : memref<1x4x16xf32, #tpu.memory_space<vmem>>, vector<1x4x1xf32>
      %25 = vector.shape_cast %24 : vector<1x4x1xf32> to vector<4x1xf32>
      %26 = vector.shape_cast %23 : vector<4x1xf32> to vector<1x4x1xf32>
      tpu.vector_store %arg4[%c0_11, %c0_12, %c15], %26 {strides = array<i32>} : memref<1x4x16xf32, #tpu.memory_space<vmem>>, vector<1x4x1xf32>,
    } else {
    }
    %c0_i32_1 = arith.constant 0 : i32
    %8 = arith.cmpi eq, %1, %c0_i32_1 : i32
    %9 = arith.extui %8 : i1 to i32
    %c0_i32_2 = arith.constant 0 : i32
    %10 = arith.cmpi ne, %9, %c0_i32_2 : i32
    scf.if %10 {
      %c0 = arith.constant 0 : index
      %c0_5 = arith.constant 0 : index
      %c0_6 = arith.constant 0 : index
      %17 = vector.load %arg3[%c0, %c0_5, %c0_6] : memref<1x4x16xf32, #tpu.memory_space<vmem>>, vector<1x4x16xf32>
      %18 = vector.shape_cast %17 : vector<1x4x16xf32> to vector<4x16xf32>
      %c0_7 = arith.constant 0 : index
      %c0_8 = arith.constant 0 : index
      %c0_9 = arith.constant 0 : index
      %19 = vector.load %arg4[%c0_7, %c0_8, %c0_9] : memref<1x4x16xf32, #tpu.memory_space<vmem>>, vector<1x4x16xf32>
      %20 = vector.shape_cast %19 : vector<1x4x16xf32> to vector<4x16xf32>
      %21 = vector.shape_cast %18 : vector<4x16xf32> to vector<1x4x16xf32>
      tpu.vector_store %arg4[%c0_7, %c0_8, %c0_9], %21 {strides = array<i32>} : memref<1x4x16xf32, #tpu.memory_space<vmem>>, vector<1x4x16xf32>,
    } else {
    }
    %c1_i32 = arith.constant 1 : i32
    %11 = arith.cmpi eq, %1, %c1_i32 : i32
    %12 = arith.extui %11 : i1 to i32
    %c0_i32_3 = arith.constant 0 : i32
    %13 = arith.cmpi ne, %12, %c0_i32_3 : i32
    scf.if %13 {
      %c0 = arith.constant 0 : index
      %c0_5 = arith.constant 0 : index
      %c0_6 = arith.constant 0 : index
      %17 = vector.load %arg3[%c0, %c0_5, %c0_6] : memref<1x4x16xf32, #tpu.memory_space<vmem>>, vector<1x4x15xf32>
      %18 = vector.shape_cast %17 : vector<1x4x15xf32> to vector<4x15xf32>
      %c0_7 = arith.constant 0 : index
      %c0_8 = arith.constant 0 : index
      %c1 = arith.constant 1 : index
      %19 = vector.load %arg4[%c0_7, %c0_8, %c1] : memref<1x4x16xf32, #tpu.memory_space<vmem>>, vector<1x4x15xf32>
      %20 = vector.shape_cast %19 : vector<1x4x15xf32> to vector<4x15xf32>
      %21 = vector.shape_cast %18 : vector<4x15xf32> to vector<1x4x15xf32>
      tpu.vector_store %arg4[%c0_7, %c0_8, %c1], %21 {strides = array<i32>} : memref<1x4x16xf32, #tpu.memory_space<vmem>>, vector<1x4x15xf32>,
      %c0_9 = arith.constant 0 : index
      %c0_10 = arith.constant 0 : index
      %c1_11 = arith.constant 1 : index
      %22 = vector.load %arg3[%c0_9, %c0_10, %c1_11] : memref<1x4x16xf32, #tpu.memory_space<vmem>>, vector<1x4x1xf32>
      %23 = vector.shape_cast %22 : vector<1x4x1xf32> to vector<4x1xf32>
      %c0_12 = arith.constant 0 : index
      %c0_13 = arith.constant 0 : index
      %c0_14 = arith.constant 0 : index
      %24 = vector.load %arg4[%c0_12, %c0_13, %c0_14] : memref<1x4x16xf32, #tpu.memory_space<vmem>>, vector<1x4x1xf32>
      %25 = vector.shape_cast %24 : vector<1x4x1xf32> to vector<4x1xf32>
      %26 = vector.shape_cast %23 : vector<4x1xf32> to vector<1x4x1xf32>
      tpu.vector_store %arg4[%c0_12, %c0_13, %c0_14], %26 {strides = array<i32>} : memref<1x4x16xf32, #tpu.memory_space<vmem>>, vector<1x4x1xf32>,
    } else {
    }
    %c2_i32 = arith.constant 2 : i32
    %14 = arith.cmpi eq, %1, %c2_i32 : i32
    %15 = arith.extui %14 : i1 to i32
    %c0_i32_4 = arith.constant 0 : i32
    %16 = arith.cmpi ne, %15, %c0_i32_4 : i32
    scf.if %16 {
      %c0 = arith.constant 0 : index
      %c0_5 = arith.constant 0 : index
      %c0_6 = arith.constant 0 : index
      %17 = vector.load %arg3[%c0, %c0_5, %c0_6] : memref<1x4x16xf32, #tpu.memory_space<vmem>>, vector<1x4x14xf32>
      %18 = vector.shape_cast %17 : vector<1x4x14xf32> to vector<4x14xf32>
      %c0_7 = arith.constant 0 : index
      %c0_8 = arith.constant 0 : index
      %c2 = arith.constant 2 : index
      %19 = vector.load %arg4[%c0_7, %c0_8, %c2] : memref<1x4x16xf32, #tpu.memory_space<vmem>>, vector<1x4x14xf32>
      %20 = vector.shape_cast %19 : vector<1x4x14xf32> to vector<4x14xf32>
      %21 = vector.shape_cast %18 : vector<4x14xf32> to vector<1x4x14xf32>
      tpu.vector_store %arg4[%c0_7, %c0_8, %c2], %21 {strides = array<i32>} : memref<1x4x16xf32, #tpu.memory_space<vmem>>, vector<1x4x14xf32>,
      %c0_9 = arith.constant 0 : index
      %c0_10 = arith.constant 0 : index
      %c2_11 = arith.constant 2 : index
      %22 = vector.load %arg3[%c0_9, %c0_10, %c2_11] : memref<1x4x16xf32, #tpu.memory_space<vmem>>, vector<1x4x1xf32>
      %23 = vector.shape_cast %22 : vector<1x4x1xf32> to vector<4x1xf32>
      %c0_12 = arith.constant 0 : index
      %c0_13 = arith.constant 0 : index
      %c0_14 = arith.constant 0 : index
      %24 = vector.load %arg4[%c0_12, %c0_13, %c0_14] : memref<1x4x16xf32, #tpu.memory_space<vmem>>, vector<1x4x1xf32>
      %25 = vector.shape_cast %24 : vector<1x4x1xf32> to vector<4x1xf32>
      %26 = vector.shape_cast %23 : vector<4x1xf32> to vector<1x4x1xf32>
      tpu.vector_store %arg4[%c0_12, %c0_13, %c0_14], %26 {strides = array<i32>} : memref<1x4x16xf32, #tpu.memory_space<vmem>>, vector<1x4x1xf32>,
      %c0_15 = arith.constant 0 : index
      %c0_16 = arith.constant 0 : index
      %c1 = arith.constant 1 : index
      %27 = vector.load %arg3[%c0_15, %c0_16, %c1] : memref<1x4x16xf32, #tpu.memory_space<vmem>>, vector<1x4x1xf32>
      %28 = vector.shape_cast %27 : vector<1x4x1xf32> to vector<4x1xf32>
      %c0_17 = arith.constant 0 : index
      %c0_18 = arith.constant 0 : index
      %c1_19 = arith.constant 1 : index
      %29 = vector.load %arg4[%c0_17, %c0_18, %c1_19] : memref<1x4x16xf32, #tpu.memory_space<vmem>>, vector<1x4x1xf32>
      %30 = vector.shape_cast %29 : vector<1x4x1xf32> to vector<4x1xf32>
      %31 = vector.shape_cast %28 : vector<4x1xf32> to vector<1x4x1xf32>
      tpu.vector_store %arg4[%c0_17, %c0_18, %c1_19], %31 {strides = array<i32>} : memref<1x4x16xf32, #tpu.memory_space<vmem>>, vector<1x4x1xf32>,
    } else {
    }
    return
  }
  func.func @transform_0(%arg0: i32, %arg1: i32, %arg2: memref<2xi32, #tpu.memory_space<smem>>) -> (i32, i32, i32) {
    %c0_i32 = arith.constant 0 : i32
    %c0_i32_0 = arith.constant 0 : i32
    return %arg0, %arg1, %c0_i32 : i32, i32, i32
  }
  func.func @transform_1(%arg0: i32, %arg1: i32, %arg2: memref<2xi32, #tpu.memory_space<smem>>) -> (i32, i32, i32) {
    %c0_i32 = arith.constant 0 : i32
    %c0_i32_0 = arith.constant 0 : i32
    return %arg0, %arg1, %c0_i32 : i32, i32, i32
  }
}

</mosaic_0001>

<llo_original>
// kernel: tpu_custom_call.1
$region0: #{tpu_custom_call.1}
  #allocation0 [shape = 'u32[]', space=smem, size = 0x4, offset = 0x4, fixed_abs, tag = 'smem constant byte address 0x4 - core index']
  #allocation1 [shape = 'u32[144,128]{1,0:T(1,128)}', space=vmem, size = 0x12000, scoped, tag = 'internal scratch']
  #allocation2 [shape = 's32[1]{0}', space=sflag, size = 0x4, scoped, tag = 'scoped memory for tpu_custom_call.1']
  #allocation3 [shape = 'u8[512]{0}', space=smem, size = 0x200, scoped, tag = 'prefetched SMEM operand 0']
  %s0 = inlined_call_operand.hbm [shape: s32[2], index: 0, kind: input, shape index: {}]
  %s1 = inlined_call_operand.hbm [shape: f32[2,4,16], index: 1, kind: input, shape index: {}]
  %s2 = inlined_call_operand.hbm [shape: f32[2,4,16], index: 2, kind: output, shape index: {}]
  %s3 = sld [smem:[#allocation0]]
  $region61: #{tpu_custom_call.1} parent=0
    _
  %s5 = ssub.s32 1, %s3
  %s6 = scalar_select 0, %s5, %s3
  %8 = dma.hbm_to_smem %s0, 16, [#allocation3], [#allocation2]
  %9 = dma.done [#allocation2], 16
  %10 = sfence
  $region1: #{tpu_custom_call.1} parent=0
    #allocation4 [shape = 'u8[4096]{0}', space=vmem, size = 0x1000, scoped, tag = 'input window, operand 1']
    #allocation5 [shape = 's32[2]{0}', space=sflag, size = 0x8, scoped, tag = 'scoped memory for tpu_custom_call.1']
    #allocation6 [shape = 's32[2]{0}', space=sflag, size = 0x8, scoped, tag = 'scoped memory for tpu_custom_call.1']
    #allocation7 [shape = 'u8[4096]{0}', space=vmem, size = 0x1000, scoped, tag = 'output window, operand 0']
    %11 = vsyncpa [#allocation5], 0
    %s12 = scalar_lea.sflag [#allocation5], 1
    %13 = vsyncpa %s12, 0
    %14 = vsyncpa [#allocation6], 0
    %s15 = scalar_lea.sflag [#allocation6], 1
    %16 = vsyncpa %s15, 0
    loop: start=0, step=1, limit=4
    $region2: #{tpu_custom_call.1} parent=1 // loop_pre_header
      _
    $region3: #{tpu_custom_call.1} parent=1 // loop_header
      %s18 = sphi 0, %s22
      %p19 = scmp.ge.s32.totalorder %s18, 4
      %s25 = sphi 0, %s37
      %s26 = sphi 0, %s33
      %s27 = sphi 0, %s25
      %s28 = sphi 0, %s26
      %s29 = sphi 0, %s27
      %s30 = sphi 0, %s28
      %s42 = sphi 0, %s44
      %s45 = sphi 0, %s42
      %s46 = sphi 0, %s45
      %s62 = sphi 0, %s46
      %s70 = sphi 0, %s72
      %s73 = sphi 0, %s70
      %s74 = sphi 0, %s73
      %s90 = sphi 0, %s74
    $region4: #{tpu_custom_call.1} parent=1 // loop_header_branch
      %21 = sbr.rel (%p19) target = $region8
    $region5: #{tpu_custom_call.1} parent=1 // loop_body
      %s23 = ssub.s32 %s18, 1
      %s24 = ssub.s32 %s18, 2
      %s31 = sadd.s32 1, %s26
      %p32 = scmp.ge.s32.totalorder %s31, 1
      %s33 = scalar_select %p32, 0, %s31
      %s34 = sadd.s32 1, %s25
      %s35 = scalar_select %p32, %s34, %s25
      %p36 = scmp.ge.s32.totalorder %s35, 2
      %s37 = scalar_select %p36, 0, %s35
      %s38 = ssub.s32 %s25, %s37
      %s39 = ssub.s32 %s26, %s33
      %s40 = sor.u32 %s38, %s39
      %p41 = scmp.eq.s32.totalorder %s40, 0
      %s43 = sadd.s32 %s42, 1
      %s44 = scalar_select %p41, %s42, %s43
      %p47 = pneg %p41
      %p48 = scmp.eq.s32.totalorder %s18, 1
      %p49 = por %p47, %p48
      %p50 = scmp.ne.s32.totalorder %s42, %s45
      %p51 = scmp.eq.s32.totalorder %s18, 0
      %p52 = por %p50, %p51
      %p53 = scmp.ne.s32.totalorder %s42, %s45
      %p54 = scmp.eq.s32.totalorder %s23, 1
      %p55 = por %p53, %p54
      %p56 = scmp.ne.s32.totalorder %s45, %s46
      %p57 = scmp.eq.s32.totalorder %s23, 0
      %p58 = por %p56, %p57
      %p59 = scmp.ne.s32.totalorder %s45, %s46
      %p60 = scmp.eq.s32.totalorder %s24, 1
      %p61 = por %p59, %p60
      %p63 = scmp.ne.s32.totalorder %s46, %s62
      %p64 = scmp.eq.s32.totalorder %s24, 0
      %p65 = por %p63, %p64
      %s66 = ssub.s32 %s25, %s37
      %s67 = ssub.s32 %s26, %s33
      %s68 = sor.u32 %s66, %s67
      %p69 = scmp.eq.s32.totalorder %s68, 0
      %s71 = sadd.s32 %s70, 1
      %s72 = scalar_select %p69, %s70, %s71
      %p75 = pneg %p69
      %p76 = scmp.eq.s32.totalorder %s18, 1
      %p77 = por %p75, %p76
      %p78 = scmp.ne.s32.totalorder %s70, %s73
      %p79 = scmp.eq.s32.totalorder %s18, 0
      %p80 = por %p78, %p79
      %p81 = scmp.ne.s32.totalorder %s70, %s73
      %p82 = scmp.eq.s32.totalorder %s23, 1
      %p83 = por %p81, %p82
      %p84 = scmp.ne.s32.totalorder %s73, %s74
      %p85 = scmp.eq.s32.totalorder %s23, 0
      %p86 = por %p84, %p85
      %p87 = scmp.ne.s32.totalorder %s73, %s74
      %p88 = scmp.eq.s32.totalorder %s24, 1
      %p89 = por %p87, %p88
      %p91 = scmp.ne.s32.totalorder %s74, %s90
      %p92 = scmp.eq.s32.totalorder %s24, 0
      %p93 = por %p91, %p92
      %p94 = scmp.le.s32.totalorder 1, %s18
      %p95 = scmp.lt.s32.totalorder %s18, 3
      %p96 = pnand %p94, %p95
      %p97 = pneg %p96
      // Predicated region
      $region9: #{tpu_custom_call.1} parent=5 // pred_check
        _
      $region10: #{tpu_custom_call.1} parent=5 // pred_check_branch
        %99 = sbr.rel (%p96) target = $region12
      $region11: #{tpu_custom_call.1} parent=5 // pred_region
        %s100 = ssub.s32 %s18, 1
      $region12: #{tpu_custom_call.1} parent=5 // pred_fallthru
        _
      %p101 = scmp.lt.s32.totalorder %s18, 2
      // Predicated region
      $region13: #{tpu_custom_call.1} parent=5 // pred_check
        %p102 = pneg %p101
      $region14: #{tpu_custom_call.1} parent=5 // pred_check_branch
        %104 = sbr.rel (%p102) target = $region16
      $region15: #{tpu_custom_call.1} parent=5 // pred_region
        // Predicated region
        $region17: #{tpu_custom_call.1} parent=15 // pred_check
          %p105 = pneg %p52
        $region18: #{tpu_custom_call.1} parent=15 // pred_check_branch
          %107 = sbr.rel (%p105) target = $region20
        $region19: #{tpu_custom_call.1} parent=15 // pred_region
          %s108 = sand.u32 %s42, 1
          %s109 = scalar_lea.sflag [#allocation5], %s108
          %s110 = sand.u32 %s42, 1
          %s111 = smul.addr %s110, 4
          %s112 = scalar_lea.vmem [#allocation4], %s111
          %s114 = ssub.s32 64, 64
          %115 = vsyncadd %s109, %s114
          %s116 = sadd.s32 %s26, %s25
          %s117 = smul.addr %s116, 64
          %s118 = scalar_lea.hbm %s1, %s117
          %s120 = sshll.u32 %s112, 4
          %s121 = int_to_ptr.vmem [resolvable:$true] %s120
          %123 = dma.hbm_to_vmem [thread:$0]  %s118, 64, %s121, %s109
        $region20: #{tpu_custom_call.1} parent=15 // pred_fallthru
          _
      $region16: #{tpu_custom_call.1} parent=5 // pred_fallthru
        _
      %p124 = scmp.le.s32.totalorder 1, %s18
      %p125 = scmp.lt.s32.totalorder %s18, 3
      %p126 = pnand %p124, %p125
      %p127 = pneg %p126
      // Predicated region
      $region21: #{tpu_custom_call.1} parent=5 // pred_check
        _
      $region22: #{tpu_custom_call.1} parent=5 // pred_check_branch
        %129 = sbr.rel (%p126) target = $region24
      $region23: #{tpu_custom_call.1} parent=5 // pred_region
        %s130 = ssub.s32 %s18, 1
        %s131 = sand.u32 %s45, 1
        %s132 = scalar_lea.sflag [#allocation5], %s131
        %s133 = sand.u32 %s45, 1
        %s134 = smul.addr %s133, 4
        %s135 = scalar_lea.vmem [#allocation4], %s134
        // Predicated region
        $region25: #{tpu_custom_call.1} parent=23 // pred_check
          %p136 = pneg %p58
        $region26: #{tpu_custom_call.1} parent=23 // pred_check_branch
          %138 = sbr.rel (%p136) target = $region28
        $region27: #{tpu_custom_call.1} parent=23 // pred_region
          %139 = dma.done %s132, 64
        $region28: #{tpu_custom_call.1} parent=23 // pred_fallthru
          _
        %s140 = sand.u32 %s45, 1
        %s141 = scalar_lea.sflag [#allocation5], %s140
        %s142 = sand.u32 %s45, 1
        %s143 = smul.addr %s142, 4
        %s144 = scalar_lea.vmem [#allocation4], %s143
        %p145 = pneg %p58
        %p146 = pneg %p55
        %p147 = pneg %p86
        %p148 = pneg %p83
        %s149 = sand.u32 %s73, 1
        %s150 = scalar_lea.sflag [#allocation6], %s149
        %s151 = sand.u32 %s73, 1
        %s152 = smul.addr %s151, 4
        %s153 = scalar_lea.vmem [#allocation7], %s152
        %s154 = sld [smem:[#allocation3 + %s27]]
        %p155 = scmp.eq.s32.totalorder %s154, 4294967294
        // Predicated region
        $region29: #{tpu_custom_call.1} parent=23 // pred_check
          %p156 = pneg %p155
        $region30: #{tpu_custom_call.1} parent=23 // pred_check_branch
          %158 = sbr.rel (%p156) target = $region32
        $region31: #{tpu_custom_call.1} parent=23 // pred_region
          %v159 = vld [vmem:[%s135] sm:$0xf]
          %161 = vrot.lane.b32.xlu0 %v159, 126
          %v162 = vpop.permute.xlu0 %161
          %vm164 = vcmask 109568
          %165 = vst.msk [vmem:[%s153] sm:$0xf] %vm164, %v162
          %v166 = vld [vmem:[%s135] sm:$0xf]
          %vm167 = vcmask 117872
          %168 = vst.msk [vmem:[%s153] sm:$0xf] %vm167, %v166
          %v169 = vld [vmem:[%s135] sm:$0xf]
          %171 = vrot.lane.b32.xlu0 %v169, 2
          %v172 = vpop.permute.xlu0 %171
          %vm174 = vcmask 126072
          %175 = vst.msk [vmem:[%s153] sm:$0xf] %vm174, %v172
        $region32: #{tpu_custom_call.1} parent=23 // pred_fallthru
          _
        %p176 = scmp.eq.s32.totalorder %s154, 4294967295
        // Predicated region
        $region33: #{tpu_custom_call.1} parent=23 // pred_check
          %p177 = pneg %p176
        $region34: #{tpu_custom_call.1} parent=23 // pred_check_branch
          %179 = sbr.rel (%p177) target = $region36
        $region35: #{tpu_custom_call.1} parent=23 // pred_region
          %v180 = vld [vmem:[%s135] sm:$0xf]
          %182 = vrot.lane.b32.xlu0 %v180, 127
          %v183 = vpop.permute.xlu0 %182
          %vm185 = vcmask 117760
          %186 = vst.msk [vmem:[%s153] sm:$0xf] %vm185, %v183
          %v187 = vld [vmem:[%s135] sm:$0xf]
          %189 = vrot.lane.b32.xlu0 %v187, 1
          %v190 = vpop.permute.xlu0 %189
          %vm192 = vcmask 126072
          %193 = vst.msk [vmem:[%s153] sm:$0xf] %vm192, %v190
        $region36: #{tpu_custom_call.1} parent=23 // pred_fallthru
          _
        %p194 = scmp.eq.s32.totalorder %s154, 0
        // Predicated region
        $region37: #{tpu_custom_call.1} parent=23 // pred_check
          %p195 = pneg %p194
        $region38: #{tpu_custom_call.1} parent=23 // pred_check_branch
          %197 = sbr.rel (%p195) target = $region40
        $region39: #{tpu_custom_call.1} parent=23 // pred_region
          %v198 = vld [vmem:[%s135] sm:$0xf]
          %vm199 = vcmask 125952
          %200 = vst.msk [vmem:[%s153] sm:$0xf] %vm199, %v198
        $region40: #{tpu_custom_call.1} parent=23 // pred_fallthru
          _
        %p201 = scmp.eq.s32.totalorder %s154, 1
        // Predicated region
        $region41: #{tpu_custom_call.1} parent=23 // pred_check
          %p202 = pneg %p201
        $region42: #{tpu_custom_call.1} parent=23 // pred_check_branch
          %204 = sbr.rel (%p202) target = $region44
        $region43: #{tpu_custom_call.1} parent=23 // pred_region
          %v205 = vld [vmem:[%s135] sm:$0xf]
          %207 = vrot.lane.b32.xlu0 %v205, 1
          %v208 = vpop.permute.xlu0 %207
          %vm210 = vcmask 125960
          %211 = vst.msk [vmem:[%s153] sm:$0xf] %vm210, %v208
          %v212 = vld [vmem:[%s135] sm:$0xf]
          %214 = vrot.lane.b32.xlu0 %v212, 127
          %v215 = vpop.permute.xlu0 %214
          %vm217 = vcmask 3072
          %218 = vst.msk [vmem:[%s153] sm:$0xf] %vm217, %v215
        $region44: #{tpu_custom_call.1} parent=23 // pred_fallthru
          _
        %p219 = scmp.eq.s32.totalorder %s154, 2
        // Predicated region
        $region45: #{tpu_custom_call.1} parent=23 // pred_check
          %p220 = pneg %p219
        $region46: #{tpu_custom_call.1} parent=23 // pred_check_branch
          %222 = sbr.rel (%p220) target = $region48
        $region47: #{tpu_custom_call.1} parent=23 // pred_region
          %v223 = vld [vmem:[%s135] sm:$0xf]
          %225 = vrot.lane.b32.xlu0 %v223, 2
          %v226 = vpop.permute.xlu0 %225
          %vm228 = vcmask 125968
          %229 = vst.msk [vmem:[%s153] sm:$0xf] %vm228, %v226
          %v230 = vld [vmem:[%s135] sm:$0xf]
          %232 = vrot.lane.b32.xlu0 %v230, 126
          %v233 = vpop.permute.xlu0 %232
          %vm235 = vcmask 3072
          %236 = vst.msk [vmem:[%s153] sm:$0xf] %vm235, %v233
          %v237 = vld [vmem:[%s135] sm:$0xf]
          %vm238 = vcmask 11272
          %239 = vst.msk [vmem:[%s153] sm:$0xf] %vm238, %v237
        $region48: #{tpu_custom_call.1} parent=23 // pred_fallthru
          _
        %s240 = sand.u32 %s73, 1
        %s241 = scalar_lea.sflag [#allocation6], %s240
        %s242 = sand.u32 %s73, 1
        %s243 = smul.addr %s242, 4
        %s244 = scalar_lea.vmem [#allocation7], %s243
        // Predicated region
        $region49: #{tpu_custom_call.1} parent=23 // pred_check
          %p245 = pneg %p83
        $region50: #{tpu_custom_call.1} parent=23 // pred_check_branch
          %247 = sbr.rel (%p245) target = $region52
        $region51: #{tpu_custom_call.1} parent=23 // pred_region
          %s249 = ssub.s32 64, 64
          %250 = vsyncadd %s241, %s249
          %s251 = sadd.s32 %s28, %s27
          %s252 = smul.addr %s251, 64
          %s253 = scalar_lea.hbm %s2, %s252
          %s255 = sshll.u32 %s244, 4
          %s256 = int_to_ptr.vmem [resolvable:$true] %s255
          %258 = dma.vmem_to_hbm [thread:$0]  %s256, 64, %s253, %s241
        $region52: #{tpu_custom_call.1} parent=23 // pred_fallthru
          _
      $region24: #{tpu_custom_call.1} parent=5 // pred_fallthru
        _
      %p259 = scmp.le.s32.totalorder 2, %s18
      // Predicated region
      $region53: #{tpu_custom_call.1} parent=5 // pred_check
        %p260 = pneg %p259
      $region54: #{tpu_custom_call.1} parent=5 // pred_check_branch
        %262 = sbr.rel (%p260) target = $region56
      $region55: #{tpu_custom_call.1} parent=5 // pred_region
        %s263 = ssub.s32 %s18, 2
        // Predicated region
        $region57: #{tpu_custom_call.1} parent=55 // pred_check
          %p264 = pneg %p89
        $region58: #{tpu_custom_call.1} parent=55 // pred_check_branch
          %266 = sbr.rel (%p264) target = $region60
        $region59: #{tpu_custom_call.1} parent=55 // pred_region
          %s267 = sand.u32 %s74, 1
          %s268 = scalar_lea.sflag [#allocation6], %s267
          %s269 = sand.u32 %s74, 1
          %s270 = smul.addr %s269, 4
          %s271 = scalar_lea.vmem [#allocation7], %s270
          %272 = dma.done %s268, 64
        $region60: #{tpu_custom_call.1} parent=55 // pred_fallthru
          _
      $region56: #{tpu_custom_call.1} parent=5 // pred_fallthru
        _
    $region6: #{tpu_custom_call.1} parent=1 // loop_footer
      %s22 = sadd.s32 1, %s18
    $region7: #{tpu_custom_call.1} parent=1 // loop_footer_branch
      %17 = sbr.rel target = $region3
    $region8: #{tpu_custom_call.1} parent=1 // loop_exit
      _
    %273 = vsyncpa [#allocation5], 1
    %s274 = scalar_lea.sflag [#allocation5], 1
    %275 = vsyncpa %s274, 1
    %276 = vsyncpa [#allocation6], 1
    %s277 = scalar_lea.sflag [#allocation6], 1
    %278 = vsyncpa %s277, 1

</llo_original>
